<compile_context>
chip_gen: v7x
topology: tpu7x:2x2x1
jax: 0.10.0
libtpu: 0.0.40
codegen_flags: <defaults>
</compile_context>

<pallas_src>
import math

import jax
import jax.numpy as jnp
from jax.experimental import pallas as pl
from jax.experimental.pallas import tpu as pltpu


_LANE = 128                              # TPU lane width: last block dim.
_TARGET_BLOCK_BYTES = 2 * 1024 * 1024    # ~2 MiB input block. Pipeline footprint
                                         # = (in + out) * 2 buffers ~= 8 MiB ->
                                         # safe on v5e (16 MiB scoped VMEM) and
                                         # >=85% of HBM roofline on v6e/v7x.


def _drop_path_kernel(scale_ref, x_ref, o_ref):
    # scale_ref: (Bblk, 1, 1) per-sample scale (0 or 1/keep_prob), in x.dtype.
    # x_ref/o_ref: (Bblk, TR, 128) tiles of the flattened input / output.
    o_ref[...] = x_ref[...] * scale_ref[...]


def _choose_tiling(B, rows, itemsize):
    """Pick (Bblk, tr) so each block carries ~_TARGET_BLOCK_BYTES of payload."""
    sub = max(8, 32 // itemsize)          # sublane pack: 8 f32, 16 bf16, 32 int8/fp8
    row_bytes = _LANE * itemsize
    per_sample_bytes = max(rows * row_bytes, 1)

    if per_sample_bytes <= _TARGET_BLOCK_BYTES:
        # Whole sample fits in one row tile.  tr == rows equals the full array
        # dim -> always layout-legal (no divisibility requirement, no masking
        # except at most one partial sublane group).  Amortize the per-step
        # overhead by packing several samples into one block.
        tr = rows
        bblk = max(1, min(B, _TARGET_BLOCK_BYTES // per_sample_bytes))
    else:
        # One sample per block; tile rows in dtype-aligned ~2 MiB chunks.
        # rows need not be a multiple of tr: the boundary tile is masked.
        bblk = 1
        tr = max(sub, (_TARGET_BLOCK_BYTES // row_bytes) // sub * sub)
        tr = min(tr, rows)
    return bblk, tr


def _drop_path_apply(x, scale):
    """x: (B, ...).  scale: (B,) per-sample scale.  Returns x * scale[b]."""
    orig_shape = x.shape
    B = orig_shape[0]
    L = int(math.prod(orig_shape[1:]))    # prod(()) == 1 handles ndim == 1
    itemsize = jnp.dtype(x.dtype).itemsize

    rows = pl.cdiv(L, _LANE)
    lane_pad = rows * _LANE - L           # only non-zero when L % 128 != 0

    xf = x.reshape(B, L)
    if lane_pad:
        xf = jnp.pad(xf, ((0, 0), (0, lane_pad)))
    x3 = xf.reshape(B, rows, _LANE)

    bblk, tr = _choose_tiling(B, rows, itemsize)
    grid = (pl.cdiv(B, bblk), pl.cdiv(rows, tr))

    scale3 = scale.astype(x.dtype).reshape(B, 1, 1)

    out3 = pl.pallas_call(
        _drop_path_kernel,
        out_shape=jax.ShapeDtypeStruct((B, rows, _LANE), x.dtype),
        grid=grid,
        in_specs=[
            pl.BlockSpec((bblk, 1, 1), lambda b, t: (b, 0, 0)),       # scale
            pl.BlockSpec((bblk, tr, _LANE), lambda b, t: (b, t, 0)),  # x tile
        ],
        out_specs=pl.BlockSpec((bblk, tr, _LANE), lambda b, t: (b, t, 0)),
        compiler_params=pltpu.CompilerParams(
            dimension_semantics=("parallel", "parallel")),
    )(scale3, x3)

    if lane_pad:
        return out3.reshape(B, rows * _LANE)[:, :L].reshape(orig_shape)
    return out3.reshape(orig_shape)


def drop_path_f(x, drop_prob: float = 0.0, training: bool = False, key=None):
    """JAX/Pallas equivalent of the PyTorch drop_path_f."""
    if drop_prob is None or drop_prob == 0.0 or not training:
        return x
    # NOTE: drop_prob == 1.0 -> keep_prob == 0 -> inf/nan, same as PyTorch.
    keep_prob = 1.0 - drop_prob
    B = x.shape[0]
    if key is None:
        # Deterministic fallback (fine for demos; pass a fresh key in training).
        key = jax.random.PRNGKey(0)
    # Same math as PyTorch: floor(keep_prob + U[0,1)) -> Bernoulli(keep_prob).
    u = jax.random.uniform(key, (B,), dtype=jnp.float32)
    scale = jnp.floor(keep_prob + u) / keep_prob          # 0 or 1/keep_prob
    return _drop_path_apply(x, scale)


class DropPath:
    """Drop paths (stochastic depth) per sample — Pallas TPU implementation."""

    def __init__(self, drop_prob=None):
        self.drop_prob = drop_prob
        self.training = True

    def __call__(self, x, key=None):
        p = 0.0 if self.drop_prob is None else self.drop_prob
        return drop_path_f(x, p, self.training, key)


if __name__ == "__main__":
    key = jax.random.PRNGKey(0)
    k_x, k_drop = jax.random.split(key)

    B, C, H, W = 2, 4, 16, 16
    x = jax.random.normal(k_x, (B, C, H, W), dtype=jnp.float32)

    drop_prob = 0.3
    dp = DropPath(drop_prob)
    dp.training = True

    out = jax.block_until_ready(dp(x, key=k_drop))
    assert out.shape == x.shape

    # Pure-JAX reference with the same RNG draw.
    keep_prob = 1.0 - drop_prob
    u = jax.random.uniform(k_drop, (B,), dtype=jnp.float32)
    ref_scale = jnp.floor(keep_prob + u) / keep_prob
    ref = x * ref_scale.reshape(B, 1, 1, 1)
    assert jnp.allclose(out, ref, atol=1e-6, rtol=1e-6)

    # Eval mode / drop_prob == 0 is an exact identity (no kernel launch).
    dp.training = False
    out_eval = jax.block_until_ready(dp(x, key=k_drop))
    assert jnp.array_equal(out_eval, x)

    # Non-lane-aligned trailing shape exercises the lane-pad path.
    dp.training = True
    x2 = jax.random.normal(k_x, (2, 7, 5, 3), dtype=jnp.float32)
    out2 = jax.block_until_ready(dp(x2, key=k_drop))
    ref2 = x2 * ref_scale.reshape(2, 1, 1, 1)
    assert jnp.allclose(out2, ref2, atol=1e-6, rtol=1e-6)

    print("KERNEL_OK")
</pallas_src>

<mosaic_0001>
module attributes {stable_mosaic.version = 11 : i64} {
  func.func @_drop_path_kernel(%arg0: i32, %arg1: i32, %arg2: memref<2x1x1xf32, #tpu.memory_space<vmem>>, %arg3: memref<2x8x128xf32, #tpu.memory_space<vmem>>, %arg4: memref<2x8x128xf32, #tpu.memory_space<vmem>>) attributes {dimension_semantics = [#tpu.dimension_semantics<parallel>, #tpu.dimension_semantics<parallel>], iteration_bounds = array<i64: 1, 1>, scalar_prefetch = 0 : i64, scratch_operands = 0 : i64, tpu.core_type = #tpu.core_type<tc>, window_params = [{transform_indices = @transform_0, window_bounds = array<i64: 2, 1, 1>}, {transform_indices = @transform_1, window_bounds = array<i64: 2, 8, 128>}, {transform_indices = @transform_2, window_bounds = array<i64: 2, 8, 128>}]} {
    %c0 = arith.constant 0 : index
    %c0_0 = arith.constant 0 : index
    %c0_1 = arith.constant 0 : index
    %0 = vector.load %arg3[%c0, %c0_0, %c0_1] : memref<2x8x128xf32, #tpu.memory_space<vmem>>, vector<2x8x128xf32>
    %c0_2 = arith.constant 0 : index
    %c0_3 = arith.constant 0 : index
    %c0_4 = arith.constant 0 : index
    %1 = vector.load %arg2[%c0_2, %c0_3, %c0_4] : memref<2x1x1xf32, #tpu.memory_space<vmem>>, vector<2x1x1xf32>
    %2 = vector.broadcast %1 : vector<2x1x1xf32> to vector<2x8x128xf32>
    %3 = arith.mulf %0, %2 : vector<2x8x128xf32>
    %c0_5 = arith.constant 0 : index
    %c0_6 = arith.constant 0 : index
    %c0_7 = arith.constant 0 : index
    %4 = vector.load %arg4[%c0_5, %c0_6, %c0_7] : memref<2x8x128xf32, #tpu.memory_space<vmem>>, vector<2x8x128xf32>
    tpu.vector_store %arg4[%c0_5, %c0_6, %c0_7], %3 {strides = array<i32>} : memref<2x8x128xf32, #tpu.memory_space<vmem>>, vector<2x8x128xf32>,
    return
  }
  func.func @transform_0(%arg0: i32, %arg1: i32) -> (i32, i32, i32) {
    %c0_i32 = arith.constant 0 : i32
    %c0_i32_0 = arith.constant 0 : i32
    %c0_i32_1 = arith.constant 0 : i32
    return %arg0, %c0_i32, %c0_i32_0 : i32, i32, i32
  }
  func.func @transform_1(%arg0: i32, %arg1: i32) -> (i32, i32, i32) {
    %c0_i32 = arith.constant 0 : i32
    %c0_i32_0 = arith.constant 0 : i32
    return %arg0, %arg1, %c0_i32 : i32, i32, i32
  }
  func.func @transform_2(%arg0: i32, %arg1: i32) -> (i32, i32, i32) {
    %c0_i32 = arith.constant 0 : i32
    %c0_i32_0 = arith.constant 0 : i32
    return %arg0, %arg1, %c0_i32 : i32, i32, i32
  }
}

</mosaic_0001>

<llo_original>
// kernel: tpu_custom_call.1
$region0: #{tpu_custom_call.1}
  #allocation0 [shape = 'u32[]', space=smem, size = 0x4, offset = 0x4, fixed_abs, tag = 'smem constant byte address 0x4 - core index']
  #allocation1 [shape = 'u32[144,128]{1,0:T(1,128)}', space=vmem, size = 0x12000, scoped, tag = 'internal scratch']
  %s0 = inlined_call_operand.vmem [shape: f32[2,1,1], index: 0, kind: input, shape index: {}]
  %s1 = inlined_call_operand.hbm [shape: f32[2,8,128], index: 1, kind: input, shape index: {}]
  %s2 = inlined_call_operand.hbm [shape: f32[2,8,128], index: 2, kind: output, shape index: {}]
  %s3 = sld [smem:[#allocation0]]
  $region22: #{tpu_custom_call.1} parent=0
    _
  %s5 = ssub.s32 1, %s3
  %s6 = scalar_select 0, %s5, %s3
  $region1: #{tpu_custom_call.1} parent=0
    #allocation2 [shape = 'u8[8192]{0}', space=vmem, size = 0x2000, scoped, tag = 'input window, operand 1, single buffered']
    #allocation3 [shape = 's32[1]{0}', space=sflag, size = 0x4, scoped, tag = 'scoped memory for tpu_custom_call.1']
    #allocation4 [shape = 's32[1]{0}', space=sflag, size = 0x4, scoped, tag = 'scoped memory for tpu_custom_call.1']
    #allocation5 [shape = 'u8[8192]{0}', space=vmem, size = 0x2000, scoped, tag = 'output window, operand 0, single buffered']
    %7 = vsyncpa [#allocation3], 0
    %8 = vsyncpa [#allocation4], 0
    // Predicated region
    $region2: #{tpu_custom_call.1} parent=1 // pred_check
      _
    $region3: #{tpu_custom_call.1} parent=1 // pred_check_branch
      %10 = sbr.rel (0) target = $region5
    $region4: #{tpu_custom_call.1} parent=1 // pred_region
      _
    $region5: #{tpu_custom_call.1} parent=1 // pred_fallthru
      _
    // Predicated region
    $region6: #{tpu_custom_call.1} parent=1 // pred_check
      _
    $region7: #{tpu_custom_call.1} parent=1 // pred_check_branch
      %12 = sbr.rel (0) target = $region9
    $region8: #{tpu_custom_call.1} parent=1 // pred_region
      %s14 = ssub.s32 256, 256
      %15 = vsyncadd [#allocation3], %s14
      %s16 = sshll.u32 [#allocation2], 4
      %s17 = int_to_ptr.vmem [resolvable:$true] %s16
      %22 = dma.hbm_to_vmem [thread:$0]  %s1, 256, %s17, [#allocation3], 128, 128, 8
    $region9: #{tpu_custom_call.1} parent=1 // pred_fallthru
      _
    // Predicated region
    $region10: #{tpu_custom_call.1} parent=1 // pred_check
      _
    $region11: #{tpu_custom_call.1} parent=1 // pred_check_branch
      %24 = sbr.rel (0) target = $region13
    $region12: #{tpu_custom_call.1} parent=1 // pred_region
      %25 = dma.done [#allocation3], 256
    $region13: #{tpu_custom_call.1} parent=1 // pred_fallthru
      _
    %v26 = vld [vmem:[#allocation2] sm:$0xff]
    %v27 = vld [vmem:[#allocation2 + $0x8] sm:$0xff]
    %v28 = vld [vmem:[%s0] sm:$0x1]
    %v29 = vld [vmem:[%s0 + $0x1] sm:$0x1]
    %v32 = vlaneseq
    %v33 = vshrl.u32 %v32, 7
    %v34 = vsub.s32 0, %v33
    %v35 = vrot.slane %v28, %v34
    %v36 = vlaneseq
    %v37 = vshrl.u32 %v36, 7
    %v38 = vsub.s32 0, %v37
    %v39 = vrot.slane %v29, %v38
    %40 = vset.pattern.permute.xlu0 0
    %41 = vperm.xlu0 %40, %v35
    %v42 = vpop.permute.xlu0 %41
    %44 = vset.pattern.permute.xlu0 0
    %45 = vperm.xlu0 %44, %v39
    %v46 = vpop.permute.xlu0 %45
    %v48 = vmul.f32 %v26, %v42
    %v49 = vmul.f32 %v27, %v46
    %50 = vst [vmem:[#allocation5] sm:$0xff] %v48
    %51 = vst [vmem:[#allocation5 + $0x8] sm:$0xff] %v49
    // Predicated region
    $region14: #{tpu_custom_call.1} parent=1 // pred_check
      _
    $region15: #{tpu_custom_call.1} parent=1 // pred_check_branch
      %53 = sbr.rel (0) target = $region17
    $region16: #{tpu_custom_call.1} parent=1 // pred_region
      %s55 = ssub.s32 256, 256
      %56 = vsyncadd [#allocation4], %s55
      %s57 = sshll.u32 [#allocation5], 4
      %s58 = int_to_ptr.vmem [resolvable:$true] %s57
      %63 = dma.vmem_to_hbm [thread:$0]  %s58, 256, %s2, [#allocation4], 128, 128, 8
    $region17: #{tpu_custom_call.1} parent=1 // pred_fallthru
      _
    // Predicated region
    $region18: #{tpu_custom_call.1} parent=1 // pred_check
      _
    $region19: #{tpu_custom_call.1} parent=1 // pred_check_branch
      %65 = sbr.rel (0) target = $region21
    $region20: #{tpu_custom_call.1} parent=1 // pred_region
      %66 = dma.done [#allocation4], 256
    $region21: #{tpu_custom_call.1} parent=1 // pred_fallthru
      _
    %67 = vsyncpa [#allocation3], 1
    %68 = vsyncpa [#allocation4], 1

</llo_original>
